<compile_context>
chip_gen: v5e
topology: v5e:2x2
jax: 0.10.0
libtpu: 0.0.40
codegen_flags: <defaults>
</compile_context>

<pallas_src>
import jax
import jax.numpy as jnp
from jax.experimental import pallas as pl
from jax.experimental.pallas import tpu as pltpu


def _round_up(x: int, m: int) -> int:
    return ((x + m - 1) // m) * m


def _vmem_capacity_bytes() -> int:
    try:
        return int(pltpu.get_tpu_info().vmem_capacity_bytes)
    except Exception:
        return 64 * 1024 * 1024  # conservative: v7x per-TC VMEM


def _pick_tm(B: int, tm_cap: int) -> int:
    """M tile: multiple of 8, <= tm_cap, minimal padding waste, and >=2 M
    tiles when the batch allows (keeps both v7x TensorCores busy)."""
    m_aligned = _round_up(B, 8)
    tm_cap = max(8, (tm_cap // 8) * 8)
    if m_aligned >= 16:
        tm_cap = min(tm_cap, _round_up((m_aligned + 1) // 2, 8))
    if m_aligned <= tm_cap:
        return m_aligned
    min_pad = m_aligned - B
    best_tm, best_pad = 8, None
    for tm in range(tm_cap, 7, -8):
        pad = _round_up(B, tm) - B
        if best_pad is None or pad < best_pad:
            best_tm, best_pad = tm, pad
            if pad == min_pad:
                break
    return best_tm


def _largest_divisor_tile(dim_pad: int, cap: int) -> int:
    """Largest multiple of 128 that divides dim_pad and is <= cap."""
    t = (min(cap, dim_pad) // 128) * 128
    t = max(t, 128)
    while t > 128 and dim_pad % t != 0:
        t -= 128
    return t


# ----------------------------- kernels --------------------------------------

def _linear_resident_kernel(x_ref, w_ref, b_ref, o_ref):
    # x_ref: (tm, K)  w_ref: (K, N)  b_ref: (1, N) f32  o_ref: (tm, N)
    # Whole weight resident in VMEM: one MXU matmul per M tile, bias in f32.
    acc = jnp.dot(x_ref[...], w_ref[...], preferred_element_type=jnp.float32)
    o_ref[...] = (acc + b_ref[...]).astype(o_ref.dtype)


def _linear_tiled_kernel_f32out(x_ref, w_ref, b_ref, o_ref):
    # f32 output block doubles as the accumulator (resident across K axis).
    k = pl.program_id(2)

    @pl.when(k == 0)
    def _():
        o_ref[...] = jnp.zeros_like(o_ref)

    o_ref[...] += jnp.dot(
        x_ref[...], w_ref[...], preferred_element_type=jnp.float32
    )

    @pl.when(k == pl.num_programs(2) - 1)
    def _():
        o_ref[...] += b_ref[...]


def _linear_tiled_kernel_acc(x_ref, w_ref, b_ref, o_ref, acc_ref):
    # Non-f32 output: accumulate in an f32 VMEM scratch, cast in the epilogue.
    k = pl.program_id(2)

    @pl.when(k == 0)
    def _():
        acc_ref[...] = jnp.zeros_like(acc_ref)

    acc_ref[...] += jnp.dot(
        x_ref[...], w_ref[...], preferred_element_type=jnp.float32
    )

    @pl.when(k == pl.num_programs(2) - 1)
    def _():
        o_ref[...] = (acc_ref[...] + b_ref[...]).astype(o_ref.dtype)


# ----------------------------- module wrapper -------------------------------

class PallasEncoder:
    """Pallas TPU equivalent of the PyTorch `Encoder` (one nn.Linear).

    Weight is transposed to (K, N), lane-padded and cast to the compute dtype
    ONCE here; each forward only (optionally) pads/casts the activations.
    """

    def __init__(self, weight, bias, *, compute_dtype=jnp.bfloat16,
                 out_dtype=None):
        emb_dim, input_dim = weight.shape
        self.input_dim = int(input_dim)
        self.emb_dim = int(emb_dim)
        self.compute_dtype = compute_dtype
        self.out_dtype = out_dtype

        self.k_pad = _round_up(self.input_dim, 128)
        self.n_pad = _round_up(self.emb_dim, 128)

        w_kn = jnp.asarray(weight).T.astype(compute_dtype)  # (K, N) layout
        self.w_kn = jnp.pad(
            w_kn,
            ((0, self.k_pad - self.input_dim), (0, self.n_pad - self.emb_dim)),
        )
        # Bias stays f32: the bias add happens on the f32 accumulator.
        self.bias = jnp.pad(
            jnp.asarray(bias).astype(jnp.float32),
            (0, self.n_pad - self.emb_dim),
        ).reshape(1, self.n_pad)

        # Generation-aware VMEM budget (64 MiB on v7x, 128 MiB on v5e/v6e).
        self.vmem_cap = _vmem_capacity_bytes()
        self.vmem_limit = min(int(self.vmem_cap * 0.6), 96 * 1024 * 1024)

    # ----------------------------------------------------------------- call
    def __call__(self, x):
        B, input_dim = x.shape
        assert input_dim == self.input_dim
        out_dtype = self.out_dtype or x.dtype
        c_item = jnp.dtype(self.compute_dtype).itemsize
        out_item = jnp.dtype(out_dtype).itemsize
        k_pad, n_pad = self.k_pad, self.n_pad

        x_c = x if x.dtype == self.compute_dtype else x.astype(self.compute_dtype)

        # Resident path if the (double-buffered) weight + bias fit comfortably
        # and there is room left for at least a tm=8 x/out double buffer.
        w_bytes_db = 2 * (k_pad * n_pad * c_item + n_pad * 4)
        per_row = 2 * (k_pad * c_item + n_pad * out_item)
        resident = (
            w_bytes_db <= self.vmem_limit // 2
            and (self.vmem_limit - w_bytes_db) >= 8 * per_row
        )

        if resident:
            tm_cap = max(8, ((self.vmem_limit - w_bytes_db) // per_row))
            tm = _pick_tm(B, min(tm_cap, 1024))
            m_pad = _round_up(B, tm)
            if x_c.shape != (m_pad, k_pad):
                x_c = jnp.pad(
                    x_c, ((0, m_pad - B), (0, k_pad - input_dim))
                )
            grid = (m_pad // tm,)

            out_p = pl.pallas_call(
                _linear_resident_kernel,
                out_shape=jax.ShapeDtypeStruct((m_pad, n_pad), out_dtype),
                grid_spec=pltpu.PrefetchScalarGridSpec(
                    num_scalar_prefetch=0,
                    grid=grid,
                    in_specs=[
                        pl.BlockSpec((tm, k_pad), lambda i: (i, 0)),
                        # Whole weight / bias resident: constant block index,
                        # so W is DMA'd from HBM exactly once.
                        pl.BlockSpec((k_pad, n_pad), lambda i: (0, 0)),
                        pl.BlockSpec((1, n_pad), lambda i: (0, 0)),
                    ],
                    out_specs=pl.BlockSpec((tm, n_pad), lambda i: (i, 0)),
                ),
                compiler_params=pltpu.CompilerParams(
                    dimension_semantics=("parallel",),
                    vmem_limit_bytes=self.vmem_limit,
                ),
                cost_estimate=pl.CostEstimate(
                    flops=2 * m_pad * k_pad * n_pad,
                    transcendentals=0,
                    bytes_accessed=(
                        m_pad * k_pad * c_item
                        + k_pad * n_pad * c_item
                        + m_pad * n_pad * out_item
                    ),
                ),
            )(x_c, self.w_kn, self.bias)
        else:
            out_p = self._tiled_call(x_c, B, out_dtype)

        if out_p.shape == (B, self.emb_dim):
            return out_p
        return out_p[:B, : self.emb_dim]

    # --------------------------------------------------------- tiled fallback
    def _tiled_call(self, x_c, B, out_dtype):
        """3-D (M, N, K) grid used only when W does not fit VMEM."""
        k_pad, n_pad = self.k_pad, self.n_pad
        input_dim = self.input_dim
        c_item = jnp.dtype(self.compute_dtype).itemsize
        out_item = jnp.dtype(out_dtype).itemsize

        # Generation-aware tile caps (bigger on 128 MiB v5e/v6e than 64 MiB v7x).
        big_vmem = self.vmem_limit >= 60 * 1024 * 1024
        tk_cap = 2048 if (big_vmem and c_item <= 2) else 1024
        tn_cap = 2048 if c_item <= 2 else 1024

        tk = _largest_divisor_tile(k_pad, tk_cap)
        tn = _largest_divisor_tile(n_pad, tn_cap)
        tm = _pick_tm(B, 256)
        m_pad = _round_up(B, tm)

        if x_c.shape != (m_pad, k_pad):
            x_c = jnp.pad(x_c, ((0, m_pad - B), (0, k_pad - input_dim)))

        grid = (m_pad // tm, n_pad // tn, k_pad // tk)
        f32_out = jnp.dtype(out_dtype) == jnp.dtype(jnp.float32)
        kernel = _linear_tiled_kernel_f32out if f32_out else _linear_tiled_kernel_acc
        scratch = [] if f32_out else [pltpu.VMEM((tm, tn), jnp.float32)]

        return pl.pallas_call(
            kernel,
            out_shape=jax.ShapeDtypeStruct((m_pad, n_pad), out_dtype),
            grid_spec=pltpu.PrefetchScalarGridSpec(
                num_scalar_prefetch=0,
                grid=grid,
                in_specs=[
                    pl.BlockSpec((tm, tk), lambda i, j, k: (i, k)),
                    pl.BlockSpec((tk, tn), lambda i, j, k: (k, j)),
                    pl.BlockSpec((1, tn), lambda i, j, k: (0, j)),
                ],
                out_specs=pl.BlockSpec((tm, tn), lambda i, j, k: (i, j)),
                scratch_shapes=scratch,
            ),
            compiler_params=pltpu.CompilerParams(
                dimension_semantics=("parallel", "parallel", "arbitrary"),
                vmem_limit_bytes=self.vmem_limit,
            ),
            cost_estimate=pl.CostEstimate(
                flops=2 * m_pad * k_pad * n_pad,
                transcendentals=0,
                bytes_accessed=(
                    m_pad * k_pad * c_item
                    + grid[0] * k_pad * n_pad * c_item  # W re-streamed per M tile
                    + m_pad * n_pad * out_item
                ),
            ),
        )(x_c, self.w_kn, self.bias)


# Functional convenience matching the original signature (builds the packed
# params once per call; prefer constructing PallasEncoder once and reusing it).
def encoder_forward(x, weight, bias, *, compute_dtype=jnp.bfloat16):
    return PallasEncoder(weight, bias, compute_dtype=compute_dtype)(x)


if __name__ == "__main__":
    key = jax.random.PRNGKey(0)
    kx, kw, kb = jax.random.split(key, 3)

    batch = 8
    input_dim = 32
    emb_dim = 64

    x = jax.random.normal(kx, (batch, input_dim), dtype=jnp.float32)
    # Deterministic parameter init (PyTorch nn.Linear shapes / bounds).
    bound = 1.0 / (input_dim ** 0.5)
    weight = jax.random.uniform(
        kw, (emb_dim, input_dim), minval=-bound, maxval=bound, dtype=jnp.float32
    )
    bias = jax.random.uniform(
        kb, (emb_dim,), minval=-bound, maxval=bound, dtype=jnp.float32
    )

    ref = x @ weight.T + bias

    # Default: bf16 MXU operands, f32 accumulation / bias epilogue.
    enc = PallasEncoder(weight, bias)
    out = jax.block_until_ready(enc(x))
    assert out.shape == (batch, emb_dim)
    assert out.dtype == x.dtype
    assert jnp.allclose(out, ref, atol=5e-2, rtol=5e-2)

    # Exact f32 path for a tight reference check.
    enc_f32 = PallasEncoder(weight, bias, compute_dtype=jnp.float32)
    out_f32 = jax.block_until_ready(enc_f32(x))
    assert jnp.allclose(out_f32, ref, atol=1e-5, rtol=1e-5)

    print("KERNEL_OK")
</pallas_src>

<mosaic_0001>
module attributes {stable_mosaic.version = 11 : i64} {
  func.func @_linear_resident_kernel(%arg0: i32, %arg1: memref<8x128xbf16, #tpu.memory_space<vmem>>, %arg2: memref<128x128xbf16, #tpu.memory_space<vmem>>, %arg3: memref<1x128xf32, #tpu.memory_space<vmem>>, %arg4: memref<8x128xf32, #tpu.memory_space<vmem>>) attributes {dimension_semantics = [#tpu.dimension_semantics<parallel>], iteration_bounds = array<i64: 1>, scalar_prefetch = 0 : i64, scratch_operands = 0 : i64, tpu.core_type = #tpu.core_type<tc>, window_params = [{transform_indices = @transform_0, window_bounds = array<i64: 8, 128>}, {pipeline_mode = #tpu.pipeline_mode<synchronous>, transform_indices = @transform_1, window_bounds = array<i64: 128, 128>}, {pipeline_mode = #tpu.pipeline_mode<synchronous>, transform_indices = @transform_2, window_bounds = array<i64: 1, 128>}, {transform_indices = @transform_3, window_bounds = array<i64: 8, 128>}]} {
    %c0 = arith.constant 0 : index
    %c0_0 = arith.constant 0 : index
    %0 = vector.load %arg1[%c0, %c0_0] : memref<8x128xbf16, #tpu.memory_space<vmem>>, vector<8x128xbf16>
    %c0_1 = arith.constant 0 : index
    %c0_2 = arith.constant 0 : index
    %1 = vector.load %arg2[%c0_1, %c0_2] : memref<128x128xbf16, #tpu.memory_space<vmem>>, vector<128x128xbf16>
    %cst = arith.constant dense<0.000000e+00> : vector<8x128xf32>
    %2 = tpu.matmul %0, %1, %cst {dimension_numbers = #tpu.dot_dimension_numbers<[1], [0], [0], [1], [0, 0, 1, 1], [], []>} : vector<8x128xbf16>, vector<128x128xbf16>, vector<8x128xf32> -> vector<8x128xf32>
    %c0_3 = arith.constant 0 : index
    %c0_4 = arith.constant 0 : index
    %3 = vector.load %arg3[%c0_3, %c0_4] : memref<1x128xf32, #tpu.memory_space<vmem>>, vector<1x128xf32>
    %4 = vector.broadcast %3 : vector<1x128xf32> to vector<8x128xf32>
    %5 = arith.addf %2, %4 : vector<8x128xf32>
    %c0_5 = arith.constant 0 : index
    %c0_6 = arith.constant 0 : index
    %6 = vector.load %arg4[%c0_5, %c0_6] : memref<8x128xf32, #tpu.memory_space<vmem>>, vector<8x128xf32>
    tpu.vector_store %arg4[%c0_5, %c0_6], %5 {strides = array<i32>} : memref<8x128xf32, #tpu.memory_space<vmem>>, vector<8x128xf32>,
    return
  }
  func.func @transform_0(%arg0: i32) -> (i32, i32) {
    %c0_i32 = arith.constant 0 : i32
    %c0_i32_0 = arith.constant 0 : i32
    return %arg0, %c0_i32 : i32, i32
  }
  func.func @transform_1(%arg0: i32) -> (i32, i32) {
    %c0_i32 = arith.constant 0 : i32
    %c0_i32_0 = arith.constant 0 : i32
    %c0_i32_1 = arith.constant 0 : i32
    return %c0_i32, %c0_i32_0 : i32, i32
  }
  func.func @transform_2(%arg0: i32) -> (i32, i32) {
    %c0_i32 = arith.constant 0 : i32
    %c0_i32_0 = arith.constant 0 : i32
    %c0_i32_1 = arith.constant 0 : i32
    return %c0_i32, %c0_i32_0 : i32, i32
  }
  func.func @transform_3(%arg0: i32) -> (i32, i32) {
    %c0_i32 = arith.constant 0 : i32
    %c0_i32_0 = arith.constant 0 : i32
    return %arg0, %c0_i32 : i32, i32
  }
}

</mosaic_0001>

<llo_original>
// kernel: tpu_custom_call.1
$region0: #{tpu_custom_call.1}
  #allocation0 [shape = 'u32[]', space=smem, size = 0x4, offset = 0x4, fixed_abs, tag = 'smem constant byte address 0x4 - core index']
  #allocation1 [shape = 'u32[72,128]{1,0:T(1,128)}', space=vmem, size = 0x9000, scoped, tag = 'internal scratch']
  %s0 = inlined_call_operand.hbm [shape: bf16[8,128], index: 0, kind: input, shape index: {}]
  %s1 = inlined_call_operand.hbm [shape: bf16[128,128], index: 1, kind: input, shape index: {}]
  %s2 = inlined_call_operand.vmem [shape: f32[1,128], index: 2, kind: input, shape index: {}]
  %s3 = inlined_call_operand.hbm [shape: f32[8,128], index: 3, kind: output, shape index: {}]
  %s4 = sld [smem:[#allocation0]]
  $region30: #{tpu_custom_call.1} parent=0
    _
  %s6 = ssub.s32 1, %s4
  %s7 = scalar_select 0, %s6, %s4
  $region1: #{tpu_custom_call.1} parent=0
    #allocation2 [shape = 'u8[2048]{0}', space=vmem, size = 0x800, scoped, tag = 'input window, operand 0, single buffered']
    #allocation3 [shape = 's32[1]{0}', space=sflag, size = 0x4, scoped, tag = 'scoped memory for tpu_custom_call.1']
    #allocation4 [shape = 's32[1]{0}', space=sflag, size = 0x4, scoped, tag = 'scoped memory for tpu_custom_call.1']
    #allocation5 [shape = 'u8[32768]{0}', space=vmem, size = 0x8000, scoped, tag = 'input window, operand 1, single buffered']
    #allocation6 [shape = 's32[1]{0}', space=sflag, size = 0x4, scoped, tag = 'scoped memory for tpu_custom_call.1']
    #allocation7 [shape = 'u8[4096]{0}', space=vmem, size = 0x1000, scoped, tag = 'output window, operand 0, single buffered']
    %8 = vsyncpa [#allocation3], 0
    %9 = vsyncpa [#allocation6], 0
    %10 = vsyncpa [#allocation4], 0
    // Predicated region
    $region2: #{tpu_custom_call.1} parent=1 // pred_check
      _
    $region3: #{tpu_custom_call.1} parent=1 // pred_check_branch
      %12 = sbr.rel (0) target = $region5
    $region4: #{tpu_custom_call.1} parent=1 // pred_region
      %14 = vsyncadd [#allocation3], 0
      %s16 = sshll.u32 %s0, 4
      %s17 = int_to_ptr.hbm [resolvable:$true] %s16
      %s18 = sshll.u32 [#allocation2], 4
      %s19 = int_to_ptr.vmem [resolvable:$true] %s18
      %21 = dma.hbm_to_vmem [thread:$0]  %s17, 64, %s19, [#allocation3]
    $region5: #{tpu_custom_call.1} parent=1 // pred_fallthru
      _
    // Predicated region
    $region6: #{tpu_custom_call.1} parent=1 // pred_check
      _
    $region7: #{tpu_custom_call.1} parent=1 // pred_check_branch
      %23 = sbr.rel (0) target = $region9
    $region8: #{tpu_custom_call.1} parent=1 // pred_region
      %25 = vsyncadd [#allocation6], 0
      %s26 = sshll.u32 %s1, 4
      %s27 = int_to_ptr.hbm [resolvable:$true] %s26
      %s28 = sshll.u32 [#allocation5], 4
      %s29 = int_to_ptr.vmem [resolvable:$true] %s28
      %34 = dma.hbm_to_vmem [thread:$0]  %s27, 1024, %s29, [#allocation6], 64, 64, 4
    $region9: #{tpu_custom_call.1} parent=1 // pred_fallthru
      _
    // Predicated region
    $region10: #{tpu_custom_call.1} parent=1 // pred_check
      _
    $region11: #{tpu_custom_call.1} parent=1 // pred_check_branch
      %36 = sbr.rel (0) target = $region13
    $region12: #{tpu_custom_call.1} parent=1 // pred_region
      _
    $region13: #{tpu_custom_call.1} parent=1 // pred_fallthru
      _
    // Predicated region
    $region14: #{tpu_custom_call.1} parent=1 // pred_check
      _
    $region15: #{tpu_custom_call.1} parent=1 // pred_check_branch
      %38 = sbr.rel (0) target = $region17
    $region16: #{tpu_custom_call.1} parent=1 // pred_region
      %40 = dma.done [#allocation3], 64
    $region17: #{tpu_custom_call.1} parent=1 // pred_fallthru
      _
    // Predicated region
    $region18: #{tpu_custom_call.1} parent=1 // pred_check
      _
    $region19: #{tpu_custom_call.1} parent=1 // pred_check_branch
      %42 = sbr.rel (0) target = $region21
    $region20: #{tpu_custom_call.1} parent=1 // pred_region
      %44 = dma.done [#allocation6], 1024
    $region21: #{tpu_custom_call.1} parent=1 // pred_fallthru
      _
    %v45 = vld [vmem:[#allocation2] sm:$0xf]
    %v46 = vld [vmem:[#allocation5] sm:$0xf]
    %v47 = vld [vmem:[#allocation5 + $0x4] sm:$0xf]
    %v48 = vld [vmem:[#allocation5 + $0x8] sm:$0xf]
    %v49 = vld [vmem:[#allocation5 + $0xc] sm:$0xf]
    %v50 = vld [vmem:[#allocation5 + $0x10] sm:$0xf]
    %v51 = vld [vmem:[#allocation5 + $0x14] sm:$0xf]
    %v52 = vld [vmem:[#allocation5 + $0x18] sm:$0xf]
    %v53 = vld [vmem:[#allocation5 + $0x1c] sm:$0xf]
    %v54 = vld [vmem:[#allocation5 + $0x20] sm:$0xf]
    %v55 = vld [vmem:[#allocation5 + $0x24] sm:$0xf]
    %v56 = vld [vmem:[#allocation5 + $0x28] sm:$0xf]
    %v57 = vld [vmem:[#allocation5 + $0x2c] sm:$0xf]
    %v58 = vld [vmem:[#allocation5 + $0x30] sm:$0xf]
    %v59 = vld [vmem:[#allocation5 + $0x34] sm:$0xf]
    %v60 = vld [vmem:[#allocation5 + $0x38] sm:$0xf]
    %v61 = vld [vmem:[#allocation5 + $0x3c] sm:$0xf]
    %v62 = vld [vmem:[%s2] sm:$0x1]
    %v64 = vperm.slane %v62, 0
    %v82 = vunpack.c.l.b16 %v46
    %v83 = vunpack.c.l.b16 %v47
    %v84 = vunpack.c.l.b16 %v48
    %v85 = vunpack.c.l.b16 %v49
    %v86 = vunpack.c.l.b16 %v50
    %v87 = vunpack.c.l.b16 %v51
    %v88 = vunpack.c.l.b16 %v52
    %v89 = vunpack.c.l.b16 %v53
    %v90 = vunpack.c.l.b16 %v54
    %v91 = vunpack.c.l.b16 %v55
    %v92 = vunpack.c.l.b16 %v56
    %v93 = vunpack.c.l.b16 %v57
    %v94 = vunpack.c.l.b16 %v58
    %v95 = vunpack.c.l.b16 %v59
    %v96 = vunpack.c.l.b16 %v60
    %v97 = vunpack.c.l.b16 %v61
    %v98 = vpack.c.b16 %v83, %v82
    %v99 = vpack.c.b16 %v85, %v84
    %v100 = vpack.c.b16 %v87, %v86
    %v101 = vpack.c.b16 %v89, %v88
    %v102 = vpack.c.b16 %v91, %v90
    %v103 = vpack.c.b16 %v93, %v92
    %v104 = vpack.c.b16 %v95, %v94
    %v105 = vpack.c.b16 %v97, %v96
    %114 = vmatpush.bf16.msra.mxu0 %v105
    %115 = vmatpush.bf16.msra.mxu0 %v104
    %116 = vmatpush.bf16.msra.mxu0 %v103
    %117 = vmatpush.bf16.msra.mxu0 %v102
    %118 = vmatpush.bf16.msra.mxu0 %v101
    %119 = vmatpush.bf16.msra.mxu0 %v100
    %120 = vmatpush.bf16.msra.mxu0 %v99
    %121 = vmatpush.bf16.msra.mxu0 %v98
    %122 = vmatmul.bf16.gmra.mxu0 %v45
    %v123 = vpop.f32.mrf.mxu0
    %v124 = vadd.f32 %v64, %v123
    %v125 = vpop.f32.mrf.mxu0
    %126 = vdwg.mxu0
    %127 = vst [vmem:[#allocation7] sm:$0xff] %v124
    // Predicated region
    $region22: #{tpu_custom_call.1} parent=1 // pred_check
      _
    $region23: #{tpu_custom_call.1} parent=1 // pred_check_branch
      %129 = sbr.rel (0) target = $region25
    $region24: #{tpu_custom_call.1} parent=1 // pred_region
      %131 = vsyncadd [#allocation4], 0
      %s133 = sshll.u32 [#allocation7], 4
      %s134 = int_to_ptr.vmem [resolvable:$true] %s133
      %s135 = sshll.u32 %s3, 4
      %s136 = int_to_ptr.hbm [resolvable:$true] %s135
      %138 = dma.vmem_to_hbm [thread:$0]  %s134, 128, %s136, [#allocation4]
    $region25: #{tpu_custom_call.1} parent=1 // pred_fallthru
      _
    // Predicated region
    $region26: #{tpu_custom_call.1} parent=1 // pred_check
      _
    $region27: #{tpu_custom_call.1} parent=1 // pred_check_branch
      %140 = sbr.rel (0) target = $region29
    $region28: #{tpu_custom_call.1} parent=1 // pred_region
      %142 = dma.done [#allocation4], 128
    $region29: #{tpu_custom_call.1} parent=1 // pred_fallthru
      _
    %143 = vsyncpa [#allocation3], 1
    %144 = vsyncpa [#allocation6], 1
    %145 = vsyncpa [#allocation4], 1

</llo_original>
